<compile_context>
chip_gen: v7x
topology: tpu7x:2x2x1
jax: 0.10.0
libtpu: 0.0.40
codegen_flags: <defaults>
</compile_context>

<pallas_src>
import math

import jax
import jax.numpy as jnp
from jax.experimental import pallas as pl
from jax.experimental.pallas import tpu as pltpu


_TARGET_BLOCK_BYTES = 8 * 1024 * 1024    # ~8 MiB per x block
_LANE_CAP = 4096                         # widest lane block considered
_MAX_VMEM_BYTES = 48 * 1024 * 1024       # stay well under v7x's 64 MiB/TC


def _drop_path_kernel(scale_ref, x_ref, o_ref):
    # scale_ref: (tile_rows, 1)  per-row scale in x.dtype, values {0, 1/keep_prob}
    # x_ref / o_ref: (tile_rows, tile_lanes)
    o_ref[...] = x_ref[...] * scale_ref[...]


def _sublane_granule(dtype):
    itemsize = jnp.dtype(dtype).itemsize
    return {4: 8, 2: 16, 1: 32}.get(itemsize, 8)


def _pick_width(feat):
    """Largest multiple of 128 (<= _LANE_CAP) that divides `feat`, else None."""
    cand = (min(feat, _LANE_CAP) // 128) * 128
    while cand >= 128:
        if feat % cand == 0:
            return cand
        cand -= 128
    return None


def drop_path(x, key, drop_prob: float = 0.0, training: bool = False):
    """JAX/Pallas equivalent of the PyTorch drop_path / DropPath.forward."""
    if drop_prob == 0.0 or not training:
        return x

    keep_prob = 1.0 - drop_prob
    B = x.shape[0]
    F = math.prod(x.shape[1:])
    itemsize = jnp.dtype(x.dtype).itemsize
    granule = _sublane_granule(x.dtype)

    # Per-sample binary decision, identical to torch's floor(keep_prob + rand()),
    # folded with the 1/keep_prob rescale.
    # NOTE: drop_prob == 1.0 yields inf/nan here, same as the PyTorch reference.
    u = jax.random.uniform(key, (B,), dtype=jnp.float32)
    scale = (jnp.floor(keep_prob + u) * (1.0 / keep_prob)).astype(x.dtype)

    # Lane-dense layout without any pad/slice HBM passes.
    width = _pick_width(F)
    if width is not None:
        rows_per_sample = F // width             # fully dense, unmasked stores
    else:
        width = F                                # full feature axis (exempt from
        rows_per_sample = 1                      # the 128 rule); ragged tail is
                                                 # masked by Pallas on the last block
    rows = B * rows_per_sample
    x_rows = x.reshape(rows, width)
    scale_rows = jnp.repeat(scale, rows_per_sample).reshape(rows, 1)

    # Lane-block width (only < width in the "no divisor" fallback with huge F).
    tile_lanes = width if width <= _LANE_CAP else _LANE_CAP   # multiple of 128

    bytes_per_row = tile_lanes * itemsize
    tile_rows = min(rows, max(granule, _TARGET_BLOCK_BYTES // bytes_per_row))
    if tile_rows < rows:
        tile_rows = max(granule, (tile_rows // granule) * granule)
    # Guarantee >= 2 grid steps (v7x megacore sharding) when the input allows it.
    if tile_rows >= rows and tile_lanes >= width and rows >= 2 * granule:
        tile_rows = max(granule, ((rows // 2) // granule) * granule)

    grid = (pl.cdiv(rows, tile_rows), pl.cdiv(width, tile_lanes))

    # VMEM budget: double-buffered x-in, out, and lane-padded scale column.
    x_block_bytes = tile_rows * tile_lanes * itemsize
    scale_block_bytes = tile_rows * 128 * itemsize
    vmem_need = 2 * (2 * x_block_bytes + scale_block_bytes)
    vmem_limit = min(_MAX_VMEM_BYTES,
                     max(32 * 1024 * 1024, int(vmem_need * 1.25) + (1 << 20)))

    out_rows = pl.pallas_call(
        _drop_path_kernel,
        out_shape=jax.ShapeDtypeStruct((rows, width), x.dtype),
        grid=grid,
        in_specs=[
            pl.BlockSpec((tile_rows, 1), lambda i, j: (i, 0)),           # scale col
            pl.BlockSpec((tile_rows, tile_lanes), lambda i, j: (i, j)),  # x slab
        ],
        out_specs=pl.BlockSpec((tile_rows, tile_lanes), lambda i, j: (i, j)),
        compiler_params=pltpu.CompilerParams(
            dimension_semantics=("parallel", "parallel"),
            vmem_limit_bytes=vmem_limit,
        ),
        cost_estimate=pl.CostEstimate(
            flops=rows * width,
            transcendentals=0,
            bytes_accessed=2 * rows * width * itemsize + rows * itemsize,
        ),
    )(scale_rows, x_rows)

    return out_rows.reshape(x.shape)


class DropPath:
    """Mirror of the PyTorch nn.Module (no learned parameters)."""

    def __init__(self, drop_prob=None):
        self.drop_prob = drop_prob
        self.training = True

    def __call__(self, x, key=None):
        p = 0.0 if self.drop_prob is None else float(self.drop_prob)
        if key is None:
            key = jax.random.PRNGKey(0)
        return drop_path(x, key, p, self.training)


def _check_samples(out, x, keep_prob):
    ok = True
    for b in range(x.shape[0]):
        sample_out = out[b]
        zero = bool(jnp.all(sample_out == 0.0))
        scaled = bool(jnp.allclose(sample_out, x[b] / keep_prob, atol=1e-5, rtol=1e-5))
        ok = ok and (zero or scaled)
    return ok


if __name__ == "__main__":
    root = jax.random.PRNGKey(0)
    kx, kd, kx2, kd2 = jax.random.split(root, 4)

    drop_prob = 0.3
    keep_prob = 1.0 - drop_prob
    module = DropPath(drop_prob)

    # Lane-dense path: F = 4*16*16 = 1024 (multiple of 128).
    x = jax.random.normal(kx, (2, 4, 16, 16), dtype=jnp.float32)
    out = jax.block_until_ready(module(x, key=kd))
    ok = _check_samples(out, x, keep_prob)

    # No-divisor path: F = 3*5*7 = 105 (full feature axis, masked tail stores).
    x_odd = jax.random.normal(kx2, (2, 3, 5, 7), dtype=jnp.float32)
    out_odd = jax.block_until_ready(module(x_odd, key=kd2))
    ok = ok and _check_samples(out_odd, x_odd, keep_prob)

    # Eval / drop_prob==0 path must be the identity (no kernel invoked).
    module.training = False
    out_eval = jax.block_until_ready(module(x, key=kd))
    ok = ok and bool(jnp.array_equal(out_eval, x))

    assert ok, "DropPath kernel output mismatch"
    print("KERNEL_OK")
</pallas_src>

<mosaic_0001>
module attributes {stable_mosaic.version = 11 : i64} {
  func.func @_drop_path_kernel(%arg0: i32, %arg1: i32, %arg2: memref<2x1xf32, #tpu.memory_space<vmem>>, %arg3: memref<2x1024xf32, #tpu.memory_space<vmem>>, %arg4: memref<2x1024xf32, #tpu.memory_space<vmem>>) attributes {dimension_semantics = [#tpu.dimension_semantics<parallel>, #tpu.dimension_semantics<parallel>], iteration_bounds = array<i64: 1, 1>, scalar_prefetch = 0 : i64, scratch_operands = 0 : i64, tpu.core_type = #tpu.core_type<tc>, window_params = [{transform_indices = @transform_0, window_bounds = array<i64: 2, 1>}, {transform_indices = @transform_1, window_bounds = array<i64: 2, 1024>}, {transform_indices = @transform_2, window_bounds = array<i64: 2, 1024>}]} {
    %c0 = arith.constant 0 : index
    %c0_0 = arith.constant 0 : index
    %0 = vector.load %arg3[%c0, %c0_0] : memref<2x1024xf32, #tpu.memory_space<vmem>>, vector<2x1024xf32>
    %c0_1 = arith.constant 0 : index
    %c0_2 = arith.constant 0 : index
    %1 = vector.load %arg2[%c0_1, %c0_2] : memref<2x1xf32, #tpu.memory_space<vmem>>, vector<2x1xf32>
    %2 = vector.broadcast %1 : vector<2x1xf32> to vector<2x1024xf32>
    %3 = arith.mulf %0, %2 : vector<2x1024xf32>
    %c0_3 = arith.constant 0 : index
    %c0_4 = arith.constant 0 : index
    %4 = vector.load %arg4[%c0_3, %c0_4] : memref<2x1024xf32, #tpu.memory_space<vmem>>, vector<2x1024xf32>
    tpu.vector_store %arg4[%c0_3, %c0_4], %3 {strides = array<i32>} : memref<2x1024xf32, #tpu.memory_space<vmem>>, vector<2x1024xf32>,
    return
  }
  func.func @transform_0(%arg0: i32, %arg1: i32) -> (i32, i32) {
    %c0_i32 = arith.constant 0 : i32
    %c0_i32_0 = arith.constant 0 : i32
    return %arg0, %c0_i32 : i32, i32
  }
  func.func @transform_1(%arg0: i32, %arg1: i32) -> (i32, i32) {
    %c0_i32 = arith.constant 0 : i32
    return %arg0, %arg1 : i32, i32
  }
  func.func @transform_2(%arg0: i32, %arg1: i32) -> (i32, i32) {
    %c0_i32 = arith.constant 0 : i32
    return %arg0, %arg1 : i32, i32
  }
}

</mosaic_0001>

<llo_original>
// kernel: tpu_custom_call.1
$region0: #{tpu_custom_call.1}
  #allocation0 [shape = 'u32[]', space=smem, size = 0x4, offset = 0x4, fixed_abs, tag = 'smem constant byte address 0x4 - core index']
  #allocation1 [shape = 'u32[144,128]{1,0:T(1,128)}', space=vmem, size = 0x12000, scoped, tag = 'internal scratch']
  %s0 = inlined_call_operand.vmem [shape: f32[2,1], index: 0, kind: input, shape index: {}]
  %s1 = inlined_call_operand.hbm [shape: f32[2,1024], index: 1, kind: input, shape index: {}]
  %s2 = inlined_call_operand.hbm [shape: f32[2,1024], index: 2, kind: output, shape index: {}]
  %s3 = sld [smem:[#allocation0]]
  $region22: #{tpu_custom_call.1} parent=0
    _
  %s5 = ssub.s32 1, %s3
  %s6 = scalar_select 0, %s5, %s3
  $region1: #{tpu_custom_call.1} parent=0
    #allocation2 [shape = 'u8[8192]{0}', space=vmem, size = 0x2000, scoped, tag = 'input window, operand 1, single buffered']
    #allocation3 [shape = 's32[1]{0}', space=sflag, size = 0x4, scoped, tag = 'scoped memory for tpu_custom_call.1']
    #allocation4 [shape = 's32[1]{0}', space=sflag, size = 0x4, scoped, tag = 'scoped memory for tpu_custom_call.1']
    #allocation5 [shape = 'u8[8192]{0}', space=vmem, size = 0x2000, scoped, tag = 'output window, operand 0, single buffered']
    %7 = vsyncpa [#allocation3], 0
    %8 = vsyncpa [#allocation4], 0
    // Predicated region
    $region2: #{tpu_custom_call.1} parent=1 // pred_check
      _
    $region3: #{tpu_custom_call.1} parent=1 // pred_check_branch
      %10 = sbr.rel (0) target = $region5
    $region4: #{tpu_custom_call.1} parent=1 // pred_region
      _
    $region5: #{tpu_custom_call.1} parent=1 // pred_fallthru
      _
    // Predicated region
    $region6: #{tpu_custom_call.1} parent=1 // pred_check
      _
    $region7: #{tpu_custom_call.1} parent=1 // pred_check_branch
      %12 = sbr.rel (0) target = $region9
    $region8: #{tpu_custom_call.1} parent=1 // pred_region
      %s14 = ssub.s32 256, 256
      %15 = vsyncadd [#allocation3], %s14
      %s17 = sshll.u32 [#allocation2], 4
      %s18 = int_to_ptr.vmem [resolvable:$true] %s17
      %20 = dma.hbm_to_vmem [thread:$0]  %s1, 256, %s18, [#allocation3]
    $region9: #{tpu_custom_call.1} parent=1 // pred_fallthru
      _
    // Predicated region
    $region10: #{tpu_custom_call.1} parent=1 // pred_check
      _
    $region11: #{tpu_custom_call.1} parent=1 // pred_check_branch
      %22 = sbr.rel (0) target = $region13
    $region12: #{tpu_custom_call.1} parent=1 // pred_region
      %23 = dma.done [#allocation3], 256
    $region13: #{tpu_custom_call.1} parent=1 // pred_fallthru
      _
    %v24 = vld [vmem:[#allocation2] sm:$0xff]
    %v25 = vld [vmem:[#allocation2 + $0x8] sm:$0xff]
    %v26 = vld [vmem:[%s0] sm:$0x3]
    %28 = vset.pattern.permute.xlu0 0
    %29 = vperm.xlu0 %28, %v26
    %v30 = vpop.permute.xlu0 %29
    %v32 = vunpack.c.l.s4 269488144
    %v33 = vunpack.c.0.s8 %v32
    %v34 = vlaneseq
    %v35 = vshrl.u32 %v34, 7
    %v36 = vsub.s32 %v33, %v35
    %v37 = vrot.slane %v30, %v36
    %v39 = vmul.f32 %v24, %v37
    %v40 = vmul.f32 %v25, %v37
    %41 = vst [vmem:[#allocation5] sm:$0xff] %v39
    %42 = vst [vmem:[#allocation5 + $0x8] sm:$0xff] %v40
    // Predicated region
    $region14: #{tpu_custom_call.1} parent=1 // pred_check
      _
    $region15: #{tpu_custom_call.1} parent=1 // pred_check_branch
      %44 = sbr.rel (0) target = $region17
    $region16: #{tpu_custom_call.1} parent=1 // pred_region
      %s46 = ssub.s32 256, 256
      %47 = vsyncadd [#allocation4], %s46
      %s49 = sshll.u32 [#allocation5], 4
      %s50 = int_to_ptr.vmem [resolvable:$true] %s49
      %52 = dma.vmem_to_hbm [thread:$0]  %s50, 256, %s2, [#allocation4]
    $region17: #{tpu_custom_call.1} parent=1 // pred_fallthru
      _
    // Predicated region
    $region18: #{tpu_custom_call.1} parent=1 // pred_check
      _
    $region19: #{tpu_custom_call.1} parent=1 // pred_check_branch
      %54 = sbr.rel (0) target = $region21
    $region20: #{tpu_custom_call.1} parent=1 // pred_region
      %55 = dma.done [#allocation4], 256
    $region21: #{tpu_custom_call.1} parent=1 // pred_fallthru
      _
    %56 = vsyncpa [#allocation3], 1
    %57 = vsyncpa [#allocation4], 1

</llo_original>
